<compile_context>
chip_gen: v7x
topology: tpu7x:2x2x1
jax: 0.10.0
libtpu: 0.0.40
codegen_flags: <defaults>
</compile_context>

<pallas_src>
import functools
import math

import numpy as np
import jax
import jax.numpy as jnp
from jax.experimental import pallas as pl
from jax.experimental.pallas import tpu as pltpu

PYRAMID_LEVELS = [3, 4, 5, 6, 7]
ANCHOR_AREAS = [8 * 8.0, 16 * 16.0, 32 * 32.0, 64 * 64.0, 128 * 128.0]
RATIOS = np.array([0.5, 1, 1.5, 2, 2.5, 3], dtype=np.float64)
SCALES = np.array([1, 1.25, 1.58, 2, 2.25, 2.58], dtype=np.float64)
NUM_ANCH = len(RATIOS) * len(SCALES)   # 36 anchors per feature-map pixel
K4 = NUM_ANCH * 4                      # 144 interleaved [x1,y1,x2,y2] lanes
TILE_P = 2048                          # pixel tile (sublane axis); ~6 MB VMEM total


def get_anchor_wh():
    """Deterministic re-implementation of CustomAnchors._get_anchor_wh()."""
    anchor_wh = []
    for s in ANCHOR_AREAS:
        for ar in RATIOS:
            h = math.sqrt(s / ar)
            w = ar * h
            for sr in SCALES:
                anchor_wh.append([w * sr, h * sr])
    return np.asarray(anchor_wh, dtype=np.float32).reshape(len(ANCHOR_AREAS), -1, 2)


def anchor_kernel(pix_ref, tab_ref, out_ref):
    # pix_ref: (TILE, 3) f32   columns = [cx, cy, level_scale]
    # tab_ref: (1, 144)  f32   level-0 half extents, interleaved [-w/2,-h/2,+w/2,+h/2]*36
    # out_ref: (1, TILE, 144) f32
    cx = pix_ref[:, 0:1]                                   # (TILE, 1)
    cy = pix_ref[:, 1:2]                                   # (TILE, 1)
    sc = pix_ref[:, 2:3]                                   # (TILE, 1)
    lane = jax.lax.broadcasted_iota(jnp.int32, (1, K4), 1)
    center = jnp.where(lane % 2 == 0, cx, cy)              # (TILE, 144): x on even lanes
    out_ref[0] = center + sc * tab_ref[...]                # (TILE, 144)


@functools.lru_cache(maxsize=None)
def _build_tables(H, W):
    """Host precompute: per-pixel (cx, cy, level_scale) and the level-0 offset table."""
    anchor_wh = get_anchor_wh()                            # (5, 36, 2) float32
    input_size = np.array([H, W], dtype=np.float64)
    cx_l, cy_l, sc_l = [], [], []
    for i in range(len(ANCHOR_AREAS)):
        fm = np.ceil(input_size / 2.0 ** (i + 3))
        fm_h, fm_w = int(fm[0]), int(fm[1])
        g = (input_size / fm).astype(np.float32)           # [H/fm_h, W/fm_w]
        ys, xs = np.meshgrid(np.arange(fm_h, dtype=np.float32),
                             np.arange(fm_w, dtype=np.float32), indexing="ij")
        cx_l.append((xs.reshape(-1) + np.float32(0.5)) * g[0])   # quirk: x * H/fm_h
        cy_l.append((ys.reshape(-1) + np.float32(0.5)) * g[1])   # quirk: y * W/fm_w
        lvl_scale = np.float32(math.sqrt(ANCHOR_AREAS[i] / ANCHOR_AREAS[0]))
        sc_l.append(np.full(fm_h * fm_w, lvl_scale, dtype=np.float32))
    pix = np.stack([np.concatenate(cx_l),
                    np.concatenate(cy_l),
                    np.concatenate(sc_l)], axis=1).astype(np.float32)   # (P, 3)
    half0 = 0.5 * anchor_wh[0].astype(np.float64)                       # (36, 2) [w/2, h/2]
    tab = np.concatenate([-half0, half0], axis=1).reshape(1, K4)        # (1, 144)
    return pix, tab.astype(np.float32)


def custom_anchors_forward(images):
    """Pallas-backed equivalent of CustomAnchors.forward(images)."""
    B, _, H, W = images.shape
    pix, tab = _build_tables(int(H), int(W))
    P = pix.shape[0]

    tile_p = TILE_P if P >= TILE_P else max(8, ((P + 7) // 8) * 8)
    grid_p = pl.cdiv(P, tile_p)

    out = pl.pallas_call(
        anchor_kernel,
        out_shape=jax.ShapeDtypeStruct((B, P, K4), jnp.float32),
        grid=(grid_p, B),
        in_specs=[
            pl.BlockSpec((tile_p, 3), lambda i, b: (i, 0)),   # per-pixel [cx, cy, scale]
            pl.BlockSpec((1, K4), lambda i, b: (0, 0)),       # tiny shared offset table
        ],
        out_specs=pl.BlockSpec((1, tile_p, K4), lambda i, b: (b, i, 0)),
        compiler_params=pltpu.CompilerParams(
            dimension_semantics=("parallel", "parallel")),
    )(jnp.asarray(pix), jnp.asarray(tab))

    # (B, P, 144) -> (B, P*36, 4): pure row-major reshape, no transpose / extra copy.
    return out.reshape(B, P * NUM_ANCH, 4)


def reference_forward(images_shape):
    """Pure-numpy re-implementation of the PyTorch forward (f32, same op order)."""
    B, _, H, W = images_shape
    anchor_wh = get_anchor_wh()
    input_size = np.array([H, W], dtype=np.float64)
    boxes = []
    for i in range(len(ANCHOR_AREAS)):
        fm = np.ceil(input_size / 2.0 ** (i + 3))
        fm_h, fm_w = int(fm[0]), int(fm[1])
        g = (input_size / fm).astype(np.float32)
        xx = np.tile(np.arange(fm_w), fm_h).astype(np.float32)
        yy = np.repeat(np.arange(fm_h), fm_w).astype(np.float32)
        xy = (np.stack([xx, yy], axis=1) + np.float32(0.5)) * g
        xy = np.broadcast_to(xy.reshape(fm_h, fm_w, 1, 2), (fm_h, fm_w, NUM_ANCH, 2))
        wh = np.broadcast_to(anchor_wh[i].reshape(1, 1, NUM_ANCH, 2),
                             (fm_h, fm_w, NUM_ANCH, 2))
        boxes.append(np.concatenate([xy, wh], axis=3).reshape(-1, 4))
    b = np.concatenate(boxes, axis=0)
    ctr, wh = b[:, :2], b[:, 2:]
    xyxy = np.concatenate([ctr - wh / 2, ctr + wh / 2], axis=1).astype(np.float32)
    return np.broadcast_to(xyxy[None], (B,) + xyxy.shape)


if __name__ == "__main__":
    key = jax.random.PRNGKey(0)
    images = jax.random.normal(key, (2, 4, 16, 16), dtype=jnp.float32)  # NCHW

    out = custom_anchors_forward(images)
    out = jax.block_until_ready(out)

    ref = reference_forward(images.shape)
    assert out.shape == ref.shape and out.dtype == jnp.float32
    np.testing.assert_allclose(np.asarray(out), ref, rtol=1e-5, atol=1e-3)
    print("KERNEL_OK")
</pallas_src>

<mosaic_0001>
module attributes {stable_mosaic.version = 11 : i64} {
  func.func @anchor_kernel(%arg0: i32, %arg1: i32, %arg2: memref<8x3xf32, #tpu.memory_space<vmem>>, %arg3: memref<1x144xf32, #tpu.memory_space<vmem>>, %arg4: memref<1x8x144xf32, #tpu.memory_space<vmem>>) attributes {dimension_semantics = [#tpu.dimension_semantics<parallel>, #tpu.dimension_semantics<parallel>], iteration_bounds = array<i64: 1, 2>, scalar_prefetch = 0 : i64, scratch_operands = 0 : i64, tpu.core_type = #tpu.core_type<tc>, window_params = [{transform_indices = @transform_0, window_bounds = array<i64: 8, 3>}, {pipeline_mode = #tpu.pipeline_mode<synchronous>, transform_indices = @transform_1, window_bounds = array<i64: 1, 144>}, {transform_indices = @transform_2, window_bounds = array<i64: 1, 8, 144>}]} {
    %c0 = arith.constant 0 : index
    %c0_0 = arith.constant 0 : index
    %0 = vector.load %arg2[%c0, %c0_0] : memref<8x3xf32, #tpu.memory_space<vmem>>, vector<8x1xf32>
    %c0_1 = arith.constant 0 : index
    %c1 = arith.constant 1 : index
    %1 = vector.load %arg2[%c0_1, %c1] : memref<8x3xf32, #tpu.memory_space<vmem>>, vector<8x1xf32>
    %c0_2 = arith.constant 0 : index
    %c2 = arith.constant 2 : index
    %2 = vector.load %arg2[%c0_2, %c2] : memref<8x3xf32, #tpu.memory_space<vmem>>, vector<8x1xf32>
    %3 = tpu.iota {dimensions = array<i32: 1>} : vector<1x144xi32>
    %c2_i32 = arith.constant 2 : i32
    %c0_i32 = arith.constant 0 : i32
    %4 = arith.cmpi eq, %c2_i32, %c0_i32 : i32
    %c1_i32 = arith.constant 1 : i32
    %5 = arith.select %4, %c1_i32, %c2_i32 : i32
    %6 = vector.broadcast %5 : i32 to vector<1x144xi32>
    %7 = arith.remsi %3, %6 : vector<1x144xi32>
    %c0_i32_3 = arith.constant 0 : i32
    %8 = vector.broadcast %c0_i32_3 : i32 to vector<1x144xi32>
    %9 = arith.cmpi ne, %7, %8 : vector<1x144xi32>
    %c0_i32_4 = arith.constant 0 : i32
    %10 = vector.broadcast %c0_i32_4 : i32 to vector<1x144xi32>
    %11 = arith.cmpi slt, %7, %10 : vector<1x144xi32>
    %c0_i32_5 = arith.constant 0 : i32
    %12 = arith.cmpi slt, %5, %c0_i32_5 : i32
    %13 = vector.broadcast %12 : i1 to vector<1x144xi1>
    %14 = vector.broadcast %13 : vector<1x144xi1> to vector<1x144xi1>
    %15 = arith.xori %11, %14 : vector<1x144xi1>
    %16 = arith.andi %15, %9 : vector<1x144xi1>
    %17 = vector.broadcast %5 : i32 to vector<1x144xi32>
    %18 = arith.addi %7, %17 : vector<1x144xi32>
    %19 = arith.select %16, %18, %7 : vector<1x144xi1>, vector<1x144xi32>
    %c0_i32_6 = arith.constant 0 : i32
    %20 = vector.broadcast %c0_i32_6 : i32 to vector<1x144xi32>
    %21 = arith.cmpi eq, %19, %20 : vector<1x144xi32>
    %22 = vector.shape_cast %21 : vector<1x144xi1> to vector<1x144xi1>
    %23 = vector.broadcast %22 : vector<1x144xi1> to vector<8x144xi1>
    %24 = vector.shape_cast %0 : vector<8x1xf32> to vector<8x1xf32>
    %25 = vector.broadcast %24 : vector<8x1xf32> to vector<8x144xf32>
    %26 = vector.shape_cast %1 : vector<8x1xf32> to vector<8x1xf32>
    %27 = vector.broadcast %26 : vector<8x1xf32> to vector<8x144xf32>
    %28 = arith.select %23, %25, %27 : vector<8x144xi1>, vector<8x144xf32>
    %c0_7 = arith.constant 0 : index
    %c0_8 = arith.constant 0 : index
    %29 = vector.load %arg3[%c0_7, %c0_8] : memref<1x144xf32, #tpu.memory_space<vmem>>, vector<1x144xf32>
    %30 = vector.broadcast %2 : vector<8x1xf32> to vector<8x144xf32>
    %31 = vector.broadcast %29 : vector<1x144xf32> to vector<8x144xf32>
    %32 = arith.mulf %30, %31 : vector<8x144xf32>
    %33 = arith.addf %28, %32 : vector<8x144xf32>
    %c0_9 = arith.constant 0 : index
    %c0_10 = arith.constant 0 : index
    %c0_11 = arith.constant 0 : index
    %34 = vector.load %arg4[%c0_9, %c0_10, %c0_11] : memref<1x8x144xf32, #tpu.memory_space<vmem>>, vector<1x8x144xf32>
    %35 = vector.shape_cast %34 : vector<1x8x144xf32> to vector<8x144xf32>
    %36 = vector.shape_cast %33 : vector<8x144xf32> to vector<1x8x144xf32>
    tpu.vector_store %arg4[%c0_9, %c0_10, %c0_11], %36 {strides = array<i32>} : memref<1x8x144xf32, #tpu.memory_space<vmem>>, vector<1x8x144xf32>,
    return
  }
  func.func @transform_0(%arg0: i32, %arg1: i32) -> (i32, i32) {
    %c0_i32 = arith.constant 0 : i32
    %c0_i32_0 = arith.constant 0 : i32
    return %arg0, %c0_i32 : i32, i32
  }
  func.func @transform_1(%arg0: i32, %arg1: i32) -> (i32, i32) {
    %c0_i32 = arith.constant 0 : i32
    %c0_i32_0 = arith.constant 0 : i32
    %c0_i32_1 = arith.constant 0 : i32
    return %c0_i32, %c0_i32_0 : i32, i32
  }
  func.func @transform_2(%arg0: i32, %arg1: i32) -> (i32, i32, i32) {
    %c0_i32 = arith.constant 0 : i32
    %c0_i32_0 = arith.constant 0 : i32
    return %arg1, %arg0, %c0_i32 : i32, i32, i32
  }
}

</mosaic_0001>

<llo_original>
// kernel: tpu_custom_call.1
$region0: #{tpu_custom_call.1}
  #allocation0 [shape = 'u32[]', space=smem, size = 0x4, offset = 0x4, fixed_abs, tag = 'smem constant byte address 0x4 - core index']
  #allocation1 [shape = 'u32[144,128]{1,0:T(1,128)}', space=vmem, size = 0x12000, scoped, tag = 'internal scratch']
  %s0 = inlined_call_operand.vmem [shape: f32[8,3], index: 0, kind: input, shape index: {}]
  %s1 = inlined_call_operand.vmem [shape: f32[1,144], index: 1, kind: input, shape index: {}]
  %s2 = inlined_call_operand.hbm [shape: f32[2,8,144], index: 2, kind: output, shape index: {}]
  %s3 = sld [smem:[#allocation0]]
  $region41: #{tpu_custom_call.1} parent=0
    _
  %s5 = ssub.s32 1, %s3
  %s6 = scalar_select 0, %s5, %s3
  $region1: #{tpu_custom_call.1} parent=0
    #allocation2 [shape = 'u8[16384]{0}', space=vmem, size = 0x4000, scoped, tag = 'output window, operand 0']
    #allocation3 [shape = 's32[2]{0}', space=sflag, size = 0x8, scoped, tag = 'scoped memory for tpu_custom_call.1']
    %7 = vsyncpa [#allocation3], 0
    %s8 = scalar_lea.sflag [#allocation3], 1
    %9 = vsyncpa %s8, 0
    loop: start=0, step=1, limit=4
    $region2: #{tpu_custom_call.1} parent=1 // loop_pre_header
      _
    $region3: #{tpu_custom_call.1} parent=1 // loop_header
      %s11 = sphi 0, %s15
      %p12 = scmp.ge.s32.totalorder %s11, 4
      %s18 = sphi 0, %s30
      %s19 = sphi 0, %s26
      %s20 = sphi 0, %s18
      %s21 = sphi 0, %s19
      %s22 = sphi 0, %s20
      %s23 = sphi 0, %s21
      %s33 = sphi 0, %s35
      %s36 = sphi 0, %s33
      %s37 = sphi 0, %s36
      %s53 = sphi 0, %s37
      %s57 = sphi 0, %s57
      %s59 = sphi 0, %s57
      %s60 = sphi 0, %s59
      %s74 = sphi 0, %s60
      %s82 = sphi 0, %s84
      %s85 = sphi 0, %s82
      %s86 = sphi 0, %s85
      %s102 = sphi 0, %s86
    $region4: #{tpu_custom_call.1} parent=1 // loop_header_branch
      %14 = sbr.rel (%p12) target = $region8
    $region5: #{tpu_custom_call.1} parent=1 // loop_body
      %s16 = ssub.s32 %s11, 1
      %s17 = ssub.s32 %s11, 2
      %s24 = sadd.s32 1, %s19
      %p25 = scmp.ge.s32.totalorder %s24, 2
      %s26 = scalar_select %p25, 0, %s24
      %s27 = sadd.s32 1, %s18
      %s28 = scalar_select %p25, %s27, %s18
      %p29 = scmp.ge.s32.totalorder %s28, 1
      %s30 = scalar_select %p29, 0, %s28
      %s31 = ssub.s32 %s18, %s30
      %p32 = scmp.eq.s32.totalorder %s31, 0
      %s34 = sadd.s32 %s33, 1
      %s35 = scalar_select %p32, %s33, %s34
      %p38 = pneg %p32
      %p39 = scmp.eq.s32.totalorder %s11, 1
      %p40 = por %p38, %p39
      %p41 = scmp.ne.s32.totalorder %s33, %s36
      %p42 = scmp.eq.s32.totalorder %s11, 0
      %p43 = por %p41, %p42
      %p44 = scmp.ne.s32.totalorder %s33, %s36
      %p45 = scmp.eq.s32.totalorder %s16, 1
      %p46 = por %p44, %p45
      %p47 = scmp.ne.s32.totalorder %s36, %s37
      %p48 = scmp.eq.s32.totalorder %s16, 0
      %p49 = por %p47, %p48
      %p50 = scmp.ne.s32.totalorder %s36, %s37
      %p51 = scmp.eq.s32.totalorder %s17, 1
      %p52 = por %p50, %p51
      %p54 = scmp.ne.s32.totalorder %s37, %s53
      %p55 = scmp.eq.s32.totalorder %s17, 0
      %p56 = por %p54, %p55
      %s58 = sadd.s32 %s57, 1
      %p61 = scmp.eq.s32.totalorder %s11, 1
      %p62 = scmp.ne.s32.totalorder %s57, %s59
      %p63 = scmp.eq.s32.totalorder %s11, 0
      %p64 = por %p62, %p63
      %p65 = scmp.ne.s32.totalorder %s57, %s59
      %p66 = scmp.eq.s32.totalorder %s16, 1
      %p67 = por %p65, %p66
      %p68 = scmp.ne.s32.totalorder %s59, %s60
      %p69 = scmp.eq.s32.totalorder %s16, 0
      %p70 = por %p68, %p69
      %p71 = scmp.ne.s32.totalorder %s59, %s60
      %p72 = scmp.eq.s32.totalorder %s17, 1
      %p73 = por %p71, %p72
      %p75 = scmp.ne.s32.totalorder %s60, %s74
      %p76 = scmp.eq.s32.totalorder %s17, 0
      %p77 = por %p75, %p76
      %s78 = ssub.s32 %s19, %s26
      %s79 = ssub.s32 %s18, %s30
      %s80 = sor.u32 %s78, %s79
      %p81 = scmp.eq.s32.totalorder %s80, 0
      %s83 = sadd.s32 %s82, 1
      %s84 = scalar_select %p81, %s82, %s83
      %p87 = pneg %p81
      %p88 = scmp.eq.s32.totalorder %s11, 1
      %p89 = por %p87, %p88
      %p90 = scmp.ne.s32.totalorder %s82, %s85
      %p91 = scmp.eq.s32.totalorder %s11, 0
      %p92 = por %p90, %p91
      %p93 = scmp.ne.s32.totalorder %s82, %s85
      %p94 = scmp.eq.s32.totalorder %s16, 1
      %p95 = por %p93, %p94
      %p96 = scmp.ne.s32.totalorder %s85, %s86
      %p97 = scmp.eq.s32.totalorder %s16, 0
      %p98 = por %p96, %p97
      %p99 = scmp.ne.s32.totalorder %s85, %s86
      %p100 = scmp.eq.s32.totalorder %s17, 1
      %p101 = por %p99, %p100
      %p103 = scmp.ne.s32.totalorder %s86, %s102
      %p104 = scmp.eq.s32.totalorder %s17, 0
      %p105 = por %p103, %p104
      %p106 = scmp.le.s32.totalorder 1, %s11
      %p107 = scmp.lt.s32.totalorder %s11, 3
      %p108 = pnand %p106, %p107
      %p109 = pneg %p108
      // Predicated region
      $region9: #{tpu_custom_call.1} parent=5 // pred_check
        _
      $region10: #{tpu_custom_call.1} parent=5 // pred_check_branch
        %111 = sbr.rel (%p108) target = $region12
      $region11: #{tpu_custom_call.1} parent=5 // pred_region
        %s112 = ssub.s32 %s11, 1
        // Predicated region
        $region13: #{tpu_custom_call.1} parent=11 // pred_check
          %p113 = pneg %p49
        $region14: #{tpu_custom_call.1} parent=11 // pred_check_branch
          %115 = sbr.rel (%p113) target = $region16
        $region15: #{tpu_custom_call.1} parent=11 // pred_region
          %p116 = scmp.lt.s32.totalorder %s20, 0
          %s117 = scalar_select %p116, %s20, 0
          %s118 = smul.addr %s117, 8
          %s119 = scalar_lea.vmem %s0, %s118
        $region16: #{tpu_custom_call.1} parent=11 // pred_fallthru
          _
        // Predicated region
        $region17: #{tpu_custom_call.1} parent=11 // pred_check
          %p120 = pneg %p70
        $region18: #{tpu_custom_call.1} parent=11 // pred_check_branch
          %122 = sbr.rel (%p120) target = $region20
        $region19: #{tpu_custom_call.1} parent=11 // pred_region
          _
        $region20: #{tpu_custom_call.1} parent=11 // pred_fallthru
          _
      $region12: #{tpu_custom_call.1} parent=5 // pred_fallthru
        _
      %p123 = scmp.lt.s32.totalorder %s11, 2
      // Predicated region
      $region21: #{tpu_custom_call.1} parent=5 // pred_check
        %p124 = pneg %p123
      $region22: #{tpu_custom_call.1} parent=5 // pred_check_branch
        %126 = sbr.rel (%p124) target = $region24
      $region23: #{tpu_custom_call.1} parent=5 // pred_region
        _
      $region24: #{tpu_custom_call.1} parent=5 // pred_fallthru
        _
      %p127 = scmp.le.s32.totalorder 1, %s11
      %p128 = scmp.lt.s32.totalorder %s11, 3
      %p129 = pnand %p127, %p128
      %p130 = pneg %p129
      // Predicated region
      $region25: #{tpu_custom_call.1} parent=5 // pred_check
        _
      $region26: #{tpu_custom_call.1} parent=5 // pred_check_branch
        %132 = sbr.rel (%p129) target = $region28
      $region27: #{tpu_custom_call.1} parent=5 // pred_region
        %s133 = ssub.s32 %s11, 1
        %p134 = scmp.lt.s32.totalorder %s20, 0
        %s135 = scalar_select %p134, %s20, 0
        %s136 = smul.addr %s135, 8
        %s137 = scalar_lea.vmem %s0, %s136
        %p138 = pneg %p49
        %p139 = pneg %p46
        %p140 = pneg %p70
        %p141 = pneg %p67
        %p142 = pneg %p98
        %p143 = pneg %p95
        %s144 = sand.u32 %s85, 1
        %s145 = scalar_lea.sflag [#allocation3], %s144
        %s146 = sand.u32 %s85, 1
        %s147 = smul.addr %s146, 16
        %s148 = scalar_lea.vmem [#allocation2], %s147
        %p149 = scmp.lt.s32.totalorder %s20, 0
        %s150 = scalar_select %p149, %s20, 0
        %s151 = smul.addr %s150, 8
        %s152 = scalar_lea.vmem %s0, %s151
        %v153 = vld [vmem:[%s152] sm:$0xff]
        %v154 = vlaneseq
        %v155 = vand.u32 %v154, 127
        %v156 = vadd.s32 %v155, 128
        %vm157 = vcmp.lt.s32.totalorder %v155, 0
        %v158 = vsub.s32 0, %v155
        %v159 = vsel %vm157, %v158, %v155
        %v160 = vshrl.u32 %v159, 1
        %v161 = vand.u32 %v159, 1
        %v162 = vsub.s32 0, %v161
        %v163 = vsel %vm157, %v162, %v161
        %vm164 = vcmp.lt.s32.totalorder %v156, 0
        %v165 = vsub.s32 0, %v156
        %v166 = vsel %vm164, %v165, %v156
        %v167 = vshrl.u32 %v166, 1
        %v168 = vand.u32 %v166, 1
        %v169 = vsub.s32 0, %v168
        %v170 = vsel %vm164, %v169, %v168
        %vm171 = vcmp.ne.s32.totalorder %v163, 0
        %vm172 = vcmp.ne.s32.totalorder %v170, 0
        %vm173 = vcmp.lt.s32.totalorder %v163, 0
        %vm174 = vcmp.lt.s32.totalorder %v170, 0
        %vm175 = vmand %vm173, %vm171
        %vm176 = vmand %vm174, %vm172
        %v177 = vadd.s32 %v163, 2
        %v178 = vadd.s32 %v170, 2
        %v179 = vsel %vm175, %v177, %v163
        %v180 = vsel %vm176, %v178, %v170
        %vm181 = vcmp.eq.s32.totalorder %v179, 0
        %vm182 = vcmp.eq.s32.totalorder %v180, 0
        %v183 = vsel %vm181, 1, 0
        %v184 = vsel %vm182, 1, 0
        %vm185 = vcmp.eq.s32.totalorder %v183, 1
        %vm186 = vcmp.eq.s32.totalorder %v184, 1
        %188 = vset.pattern.permute.xlu0 0
        %189 = vperm.xlu0 %188, %v153
        %v190 = vpop.permute.xlu0 %189
        %192 = vset.pattern.permute.xlu0 1
        %193 = vperm.xlu0 %192, %v153
        %v194 = vpop.permute.xlu0 %193
        %v196 = vsel %vm185, %v190, %v194
        %v197 = vsel %vm186, %v190, %v194
        %v198 = vld [vmem:[%s1] sm:$0x3]
        %199 = vset.pattern.permute.xlu0 2
        %200 = vperm.xlu0 %199, %v153
        %v201 = vpop.permute.xlu0 %200
        %v204 = vlaneseq
        %v205 = vshrl.u32 %v204, 7
        %v206 = vsub.s32 0, %v205
        %v207 = vrot.slane %v198, %v206
        %v208 = vlaneseq
        %v209 = vshrl.u32 %v208, 7
        %v210 = vsub.s32 1, %v209
        %v211 = vrot.slane %v198, %v210
        %v214 = vmul.f32 %v201, %v207
        %v215 = vmul.f32 %v201, %v211
        %v216 = vadd.f32 %v196, %v214
        %v217 = vadd.f32 %v197, %v215
        %218 = vst [vmem:[%s148] sm:$0xff] %v216
        %vm219 = vcmask 130048
        %220 = vst.msk [vmem:[%s148 + $0x8] sm:$0xff] %vm219, %v217
        %s221 = sand.u32 %s85, 1
        %s222 = scalar_lea.sflag [#allocation3], %s221
        %s223 = sand.u32 %s85, 1
        %s224 = smul.addr %s223, 16
        %s225 = scalar_lea.vmem [#allocation2], %s224
        // Predicated region
        $region29: #{tpu_custom_call.1} parent=27 // pred_check
          %p226 = pneg %p95
        $region30: #{tpu_custom_call.1} parent=27 // pred_check_branch
          %228 = sbr.rel (%p226) target = $region32
        $region31: #{tpu_custom_call.1} parent=27 // pred_region
          %s230 = ssub.s32 256, 256
          %231 = vsyncadd %s222, %s230
          %s232 = smul.addr %s20, 2
          %s233 = smul.addr %s21, 2
          %s234 = sadd.s32 %s232, %s233
          %s235 = smul.addr %s234, 128
          %s236 = scalar_lea.hbm %s2, %s235
          %s238 = sshll.u32 %s225, 4
          %s239 = int_to_ptr.vmem [resolvable:$true] %s238
          %241 = dma.vmem_to_hbm [thread:$0]  %s239, 256, %s236, %s222
        $region32: #{tpu_custom_call.1} parent=27 // pred_fallthru
          _
      $region28: #{tpu_custom_call.1} parent=5 // pred_fallthru
        _
      %p242 = scmp.le.s32.totalorder 2, %s11
      // Predicated region
      $region33: #{tpu_custom_call.1} parent=5 // pred_check
        %p243 = pneg %p242
      $region34: #{tpu_custom_call.1} parent=5 // pred_check_branch
        %245 = sbr.rel (%p243) target = $region36
      $region35: #{tpu_custom_call.1} parent=5 // pred_region
        %s246 = ssub.s32 %s11, 2
        // Predicated region
        $region37: #{tpu_custom_call.1} parent=35 // pred_check
          %p247 = pneg %p101
        $region38: #{tpu_custom_call.1} parent=35 // pred_check_branch
          %249 = sbr.rel (%p247) target = $region40
        $region39: #{tpu_custom_call.1} parent=35 // pred_region
          %s250 = sand.u32 %s86, 1
          %s251 = scalar_lea.sflag [#allocation3], %s250
          %s252 = sand.u32 %s86, 1
          %s253 = smul.addr %s252, 16
          %s254 = scalar_lea.vmem [#allocation2], %s253
          %255 = dma.done %s251, 256
        $region40: #{tpu_custom_call.1} parent=35 // pred_fallthru
          _
      $region36: #{tpu_custom_call.1} parent=5 // pred_fallthru
        _
    $region6: #{tpu_custom_call.1} parent=1 // loop_footer
      %s15 = sadd.s32 1, %s11
    $region7: #{tpu_custom_call.1} parent=1 // loop_footer_branch
      %10 = sbr.rel target = $region3
    $region8: #{tpu_custom_call.1} parent=1 // loop_exit
      _
    %256 = vsyncpa [#allocation3], 1
    %s257 = scalar_lea.sflag [#allocation3], 1
    %258 = vsyncpa %s257, 1

</llo_original>
